<compile_context>
chip_gen: v5e
topology: v5e:2x2
jax: 0.10.0
libtpu: 0.0.40
codegen_flags: <defaults>
</compile_context>

<pallas_src>
import functools
import math

import jax
import jax.numpy as jnp
from jax.experimental import pallas as pl
from jax.experimental.pallas import tpu as pltpu

_NEG_INF = -1e30


def _round_up(x, m):
    return ((x + m - 1) // m) * m


def _cell_kernel(C, E, nh, mem_n, scale, eps,
                 xinp_ref, kv_ref, bias_ref,
                 wcat_ref, bcat_ref, posw2_ref, g_ref, gt2_ref, wout2_ref, vecs_ref,
                 hc_ref, kv_out_ref):
    xin = xinp_ref[...]                    # (TB, C+2E) = [x | h_cur | c_cur]
    tb = xin.shape[0]
    comb = xin[:, :C + E]                  # (TB, C+E)
    c_cur = xin[:, C + E:]                 # (TB, E)

    # One fused MXU matmul for the whole tile: [i | f | o | g | a | k | v | q] -> (TB, 8E)
    gates = (jnp.dot(comb, wcat_ref[...], preferred_element_type=jnp.float32)
             + bcat_ref[...])
    i_g = jax.nn.sigmoid(gates[:, 0 * E:1 * E])
    f_g = jax.nn.sigmoid(gates[:, 1 * E:2 * E])
    o_g = jax.nn.sigmoid(gates[:, 2 * E:3 * E])
    g_g = jnp.tanh(gates[:, 3 * E:4 * E])
    a_g = jax.nn.sigmoid(gates[:, 4 * E:5 * E])
    kv_new = gates[:, 5 * E:7 * E]         # (TB, 2E) new [k | v], head-major lanes
    q_sc = gates[:, 7 * E:8 * E] * scale   # (TB, E)

    # --- memory update: drop oldest slot (leading-dim, tile-granular), append new k/v, add
    # the positional key bias (only the k lanes of posw2 are non-zero). ---
    kv_mem = kv_ref[...]                                          # (mem_n, TB, 2E)
    kv_full = (jnp.concatenate([kv_mem[1:], kv_new[None, :, :]], axis=0)
               + posw2_ref[...][:, None, :])                      # (mem_n, TB, 2E)
    kv_out_ref[...] = kv_full

    # --- block-diagonal (per-head) attention, batched over the whole tile ---
    # scores[m, b, j] = scale * sum_d q[b, j*hd+d] * k[m, b, j*hd+d] + bias[m, b, j]
    kq = (kv_full[:, :, :E] * q_sc[None, :, :]).reshape(mem_n * tb, E)
    scores = (jnp.dot(kq, g_ref[...], preferred_element_type=jnp.float32)
              .reshape(mem_n, tb, nh) + bias_ref[...])            # (mem_n, TB, nh)
    scores = scores - jnp.max(scores, axis=0, keepdims=True)      # softmax over memory slots
    probs = jnp.exp(scores)
    probs = probs / jnp.sum(probs, axis=0, keepdims=True)
    # broadcast probs back per head onto the v lanes (GT2 = [0 | G^T]) with one matmul
    pe = jnp.dot(probs.reshape(mem_n * tb, nh), gt2_ref[...],
                 preferred_element_type=jnp.float32).reshape(mem_n, tb, 2 * E)
    attn = jnp.sum(pe * kv_full, axis=0)                          # (TB, 2E); k lanes are 0

    # output projection (Wout2 = [[0], [W_out^T]]) + bias + residual x[:, :E] + LayerNorm
    vecs = vecs_ref[...]                                          # rows: b_out, gamma, beta
    out = (jnp.dot(attn, wout2_ref[...], preferred_element_type=jnp.float32)
           + vecs[0:1, :] + xin[:, :E])
    mu = jnp.mean(out, axis=1, keepdims=True)
    var = jnp.mean(jnp.square(out - mu), axis=1, keepdims=True)
    out_n = (out - mu) * jax.lax.rsqrt(var + eps) * vecs[1:2, :] + vecs[2:3, :]

    # --- LSTM state update, fused lane-dense store [h_next | c_next] ---
    c_next = f_g * c_cur + i_g * g_g + a_g * jnp.tanh(out_n)
    h_next = o_g * jnp.tanh(c_next)
    hc_ref[...] = jnp.concatenate([h_next, c_next], axis=-1)


def prepare_weights(params, *, in_channels, embed_dim, num_heads, mem_n):
    """Once-per-sequence (or per parameter update) weight fusion; NOT per-timestep work."""
    C, E, nh = in_channels, embed_dim, num_heads
    hd = E // nh
    f32 = jnp.float32

    W_mainT = params["W_main"].astype(f32).T                        # (C+E, 5E)
    W_projT = params["W_proj"].astype(f32).T                        # (C, 3E)
    heads = jnp.arange(nh)[:, None] * (3 * hd) + jnp.arange(hd)[None, :]
    k_idx = heads.reshape(-1)
    q_idx = (heads + hd).reshape(-1)
    v_idx = (heads + 2 * hd).reshape(-1)
    zeros_h = jnp.zeros((E, E), f32)        # proj only sees the x rows; h rows are zero
    Wk = jnp.concatenate([W_projT[:, k_idx], zeros_h], axis=0)      # (C+E, E)
    Wv = jnp.concatenate([W_projT[:, v_idx], zeros_h], axis=0)
    Wq = jnp.concatenate([W_projT[:, q_idx], zeros_h], axis=0)
    Wcat = jnp.concatenate([W_mainT, Wk, Wv, Wq], axis=1)           # (C+E, 8E)

    b_proj = params["b_proj"].astype(f32)
    bcat = jnp.concatenate([params["b_main"].astype(f32),
                            b_proj[k_idx], b_proj[v_idx], b_proj[q_idx]]).reshape(1, 8 * E)

    posw2 = jnp.concatenate([params["pos_w"].astype(f32),
                             jnp.zeros((mem_n, E), f32)], axis=1)   # (mem_n, 2E)

    G = (jnp.arange(E)[:, None] // hd == jnp.arange(nh)[None, :]).astype(f32)   # (E, nh)
    GT2 = jnp.concatenate([jnp.zeros((nh, E), f32), G.T], axis=1)               # (nh, 2E)
    Wout2 = jnp.concatenate([jnp.zeros((E, E), f32),
                             params["W_out"].astype(f32).T], axis=0)            # (2E, E)

    vecs = jnp.zeros((8, E), f32)
    vecs = vecs.at[0].set(params["b_out"].astype(f32))
    vecs = vecs.at[1].set(params["gamma"].astype(f32))
    vecs = vecs.at[2].set(params["beta"].astype(f32))

    return dict(Wcat=Wcat, bcat=bcat, posw2=posw2, G=G, GT2=GT2, Wout2=Wout2,
                vecs=vecs, pos_b=params["pos_b"].astype(f32))


def conv_attn_lstm_cell_step(x2, h2, c2, kv_mem, attn_mask, prep, *,
                             embed_dim, num_heads, mem_n, attn_mask_b, batch_tile=256):
    """One recurrent step in kernel-native layouts.

    x2 : (B, C)   h2, c2 : (B, E)   kv_mem : (mem_n, B, 2E)   attn_mask : (B*nh, 1, mem_n)
    Returns h_next (B, E), c_next (B, E), kv_next (mem_n, B, 2E).
    """
    B, C = x2.shape
    E, nh = embed_dim, num_heads
    f32 = jnp.float32

    xinp = jnp.concatenate([x2.astype(f32), h2.astype(f32), c2.astype(f32)], axis=1)

    # additive attention bias: masked slots -> -1e30, newest slot -> attn_mask_b, plus pos_b
    mask_add = jnp.where(attn_mask[:, 0, :], _NEG_INF, 0.0).astype(f32)     # (B*nh, mem_n)
    mask_add = mask_add.at[:, -1].set(float(attn_mask_b))
    bias = (jnp.transpose(mask_add.reshape(B, nh, mem_n), (2, 0, 1))
            + prep["pos_b"][:, None, :])                                    # (mem_n, B, nh)

    # batch tile: 256 fills the v6e/v7x MXU; use batch_tile=128 on v5e
    TB = min(_round_up(batch_tile, 8), _round_up(B, 8))
    B_pad = _round_up(B, TB)
    kv_mem = kv_mem.astype(f32)
    if B_pad != B:
        pad = B_pad - B
        xinp = jnp.pad(xinp, ((0, pad), (0, 0)))
        kv_mem = jnp.pad(kv_mem, ((0, 0), (0, pad), (0, 0)))
        bias = jnp.pad(bias, ((0, 0), (0, pad), (0, 0)))

    scale = 1.0 / math.sqrt(E // nh)          # tot_head_dim = h*w*E/nh = hd (linear path)
    kernel = functools.partial(_cell_kernel, C, E, nh, mem_n, scale, 1e-5)

    bmap2 = lambda b: (b, 0)
    bmap3 = lambda b: (0, b, 0)
    cmap2 = lambda b: (0, 0)

    in_specs = [
        pl.BlockSpec((TB, C + 2 * E), bmap2),          # fused [x | h | c]
        pl.BlockSpec((mem_n, TB, 2 * E), bmap3),       # fused [k | v] memory
        pl.BlockSpec((mem_n, TB, nh), bmap3),          # additive attn bias
        pl.BlockSpec((C + E, 8 * E), cmap2),           # fused gate + kqv weight
        pl.BlockSpec((1, 8 * E), cmap2),               # fused bias
        pl.BlockSpec((mem_n, 2 * E), cmap2),           # [pos_w | 0]
        pl.BlockSpec((E, nh), cmap2),                  # head indicator G
        pl.BlockSpec((nh, 2 * E), cmap2),              # [0 | G^T]
        pl.BlockSpec((2 * E, E), cmap2),               # [[0], [W_out^T]]
        pl.BlockSpec((8, E), cmap2),                   # rows: b_out, gamma, beta
    ]
    out_specs = (
        pl.BlockSpec((TB, 2 * E), bmap2),              # fused [h_next | c_next]
        pl.BlockSpec((mem_n, TB, 2 * E), bmap3),       # fused [k | v] memory (next)
    )
    out_shape = (
        jax.ShapeDtypeStruct((B_pad, 2 * E), f32),
        jax.ShapeDtypeStruct((mem_n, B_pad, 2 * E), f32),
    )

    hc, kv_next = pl.pallas_call(
        kernel,
        out_shape=out_shape,
        grid_spec=pltpu.PrefetchScalarGridSpec(
            num_scalar_prefetch=0,
            grid=(B_pad // TB,),
            in_specs=in_specs,
            out_specs=out_specs,
        ),
        compiler_params=pltpu.CompilerParams(
            dimension_semantics=("parallel",)),
    )(xinp, kv_mem, bias, prep["Wcat"], prep["bcat"], prep["posw2"], prep["G"],
      prep["GT2"], prep["Wout2"], prep["vecs"])

    return hc[:B, :E], hc[:B, E:], kv_next[:, :B]


def kv_from_torch_layout(concat_k, concat_v, *, embed_dim, num_heads, mem_n):
    """(B, nh, mem_n, hd) x2 -> fused kernel layout (mem_n, B, 2E). Sequence-boundary only."""
    B = concat_k.shape[0]
    E = embed_dim
    k_hm = jnp.transpose(concat_k.astype(jnp.float32), (2, 0, 1, 3)).reshape(mem_n, B, E)
    v_hm = jnp.transpose(concat_v.astype(jnp.float32), (2, 0, 1, 3)).reshape(mem_n, B, E)
    return jnp.concatenate([k_hm, v_hm], axis=-1)


def kv_to_torch_layout(kv, *, embed_dim, num_heads, mem_n):
    """Fused kernel layout (mem_n, B, 2E) -> torch (B, nh, mem_n, hd) x2."""
    E, nh = embed_dim, num_heads
    hd = E // nh
    B = kv.shape[1]
    k = jnp.transpose(kv[:, :, :E].reshape(mem_n, B, nh, hd), (1, 2, 0, 3))
    v = jnp.transpose(kv[:, :, E:].reshape(mem_n, B, nh, hd), (1, 2, 0, 3))
    return k, v


def conv_attn_lstm_cell_forward(x, h_cur, c_cur, concat_k, concat_v, attn_mask, params, *,
                                embed_dim, num_heads, mem_n, attn_mask_b, batch_tile=256):
    """PyTorch-shaped convenience wrapper (linear / 1x1-spatial, attn=True, no pool_inject).

    In a recurrent loop, call prepare_weights / kv_from_torch_layout once and then
    conv_attn_lstm_cell_step per timestep; this wrapper bundles all of it for a single call.
    """
    B, C, Hs, Ws = x.shape
    assert Hs == 1 and Ws == 1, "Pallas kernel implements the linear (1x1 spatial) path"
    E, nh = embed_dim, num_heads
    assert C >= E, "module's residual add requires input channels >= embed_dim"
    assert mem_n >= 2

    prep = prepare_weights(params, in_channels=C, embed_dim=E, num_heads=nh, mem_n=mem_n)
    kv = kv_from_torch_layout(concat_k, concat_v, embed_dim=E, num_heads=nh, mem_n=mem_n)

    h, c, kv_next = conv_attn_lstm_cell_step(
        x[:, :, 0, 0], h_cur[:, :, 0, 0], c_cur[:, :, 0, 0], kv, attn_mask, prep,
        embed_dim=E, num_heads=nh, mem_n=mem_n, attn_mask_b=attn_mask_b,
        batch_tile=batch_tile)

    ret_k, ret_v = kv_to_torch_layout(kv_next, embed_dim=E, num_heads=nh, mem_n=mem_n)
    return h.reshape(B, E, 1, 1), c.reshape(B, E, 1, 1), ret_k, ret_v


def conv_attn_lstm_cell_reference(x, h_cur, c_cur, concat_k, concat_v, attn_mask, params,
                                  *, embed_dim, num_heads, mem_n, attn_mask_b):
    """Pure-JAX reference mirroring the PyTorch module (linear path, attn=True)."""
    B, C, Hs, Ws = x.shape
    E, nh = embed_dim, num_heads
    hd = E // nh
    tot_head_dim = Hs * Ws * E // nh

    x2 = x[:, :, 0, 0]
    h2 = h_cur[:, :, 0, 0]
    c2 = c_cur[:, :, 0, 0]

    combined = jnp.concatenate([x2, h2], axis=1)
    cc = combined @ params["W_main"].T + params["b_main"]
    cc_i, cc_f, cc_o, cc_g, cc_a = [cc[:, k * E:(k + 1) * E] for k in range(5)]
    i = jax.nn.sigmoid(cc_i)
    f = jax.nn.sigmoid(cc_f)
    o = jax.nn.sigmoid(cc_o)
    g = jnp.tanh(cc_g)
    a = jax.nn.sigmoid(cc_a)
    c_next = f * c2 + i * g

    kqv = x2 @ params["W_proj"].T + params["b_proj"]              # (B, 3E)
    kqv_r = kqv.reshape(B * nh, 3 * hd)
    k_new = kqv_r[:, :hd]
    q = kqv_r[:, hd:2 * hd]
    v_new = kqv_r[:, 2 * hd:]
    q_scaled = q / math.sqrt(tot_head_dim)

    k_pre = concat_k.reshape(B * nh, mem_n, hd)
    k = jnp.concatenate([k_pre[:, 1:], k_new[:, None, :]], axis=1)
    pos_w_e = jnp.transpose(
        jnp.broadcast_to(params["pos_w"][:, None, :], (mem_n, B, E)).reshape(mem_n, B * nh, hd),
        (1, 0, 2))
    k = k + pos_w_e
    v_pre = concat_v.reshape(B * nh, mem_n, hd)
    v = jnp.concatenate([v_pre[:, 1:], v_new[:, None, :]], axis=1)

    mask_add = jnp.where(attn_mask, _NEG_INF, 0.0).astype(jnp.float32)
    mask_add = mask_add.at[:, :, -1].set(float(attn_mask_b))
    attn_w = mask_add + jnp.einsum("bd,bmd->bm", q_scaled, k)[:, None, :]
    pos_b_e = jnp.transpose(
        jnp.broadcast_to(params["pos_b"][:, None, :], (mem_n, B, nh)).reshape(mem_n, B * nh))
    attn_w = attn_w + pos_b_e[:, None, :]
    attn_w = jax.nn.softmax(attn_w, axis=-1)
    attn_o = jnp.einsum("bqm,bmd->bqd", attn_w, v)[:, 0, :]       # (B*nh, hd)
    attn_o = attn_o.reshape(B, E)

    out = attn_o @ params["W_out"].T + params["b_out"] + x2[:, :E]
    mu = out.mean(axis=1, keepdims=True)
    var = ((out - mu) ** 2).mean(axis=1, keepdims=True)
    out = (out - mu) / jnp.sqrt(var + 1e-5) * params["gamma"] + params["beta"]

    c_next = c_next + a * jnp.tanh(out)
    h_next = o * jnp.tanh(c_next)

    ret_k = k.reshape(B, nh, mem_n, hd)
    ret_v = v.reshape(B, nh, mem_n, hd)
    return (h_next.reshape(B, E, 1, 1), c_next.reshape(B, E, 1, 1), ret_k, ret_v)


if __name__ == "__main__":
    B = 2            # batch
    C = 32           # input channels (>= embed_dim, required by the module's residual add)
    E = 32           # embed_dim
    NH = 8           # num_heads
    MEM_N = 8        # memory slots
    ATTN_MASK_B = 3.0
    HD = E // NH

    key = jax.random.PRNGKey(0)
    keys = jax.random.split(key, 16)

    x = jax.random.normal(keys[0], (B, C, 1, 1), dtype=jnp.float32)
    h_cur = jax.random.normal(keys[1], (B, E, 1, 1), dtype=jnp.float32)
    c_cur = jax.random.normal(keys[2], (B, E, 1, 1), dtype=jnp.float32)
    concat_k = jax.random.normal(keys[3], (B, NH, MEM_N, HD), dtype=jnp.float32)
    concat_v = jax.random.normal(keys[4], (B, NH, MEM_N, HD), dtype=jnp.float32)
    attn_mask = jax.random.bernoulli(keys[5], 0.3, (B * NH, 1, MEM_N))

    # Deterministic parameter init mirroring the nn.Linear / parameter inits of the module.
    bm = 1.0 / math.sqrt(C + E)
    bp = 1.0 / math.sqrt(C)
    bo = 1.0 / math.sqrt(E)
    params = dict(
        W_main=jax.random.uniform(keys[6], (5 * E, C + E), minval=-bm, maxval=bm, dtype=jnp.float32),
        b_main=jax.random.uniform(keys[7], (5 * E,), minval=-bm, maxval=bm, dtype=jnp.float32),
        W_proj=jax.random.uniform(keys[8], (3 * E, C), minval=-bp, maxval=bp, dtype=jnp.float32),
        b_proj=jax.random.uniform(keys[9], (3 * E,), minval=-bp, maxval=bp, dtype=jnp.float32),
        W_out=jax.random.uniform(keys[10], (E, E), minval=-bo, maxval=bo, dtype=jnp.float32),
        b_out=jax.random.uniform(keys[11], (E,), minval=-bo, maxval=bo, dtype=jnp.float32),
        gamma=1.0 + 0.1 * jax.random.normal(keys[12], (E,), dtype=jnp.float32),
        beta=0.1 * jax.random.normal(keys[13], (E,), dtype=jnp.float32),
        pos_w=0.1 * jax.random.normal(keys[14], (MEM_N, E), dtype=jnp.float32),
        pos_b=jax.random.uniform(keys[15], (MEM_N, NH), minval=-0.1, maxval=0.1, dtype=jnp.float32),
    )

    h_n, c_n, k_n, v_n = conv_attn_lstm_cell_forward(
        x, h_cur, c_cur, concat_k, concat_v, attn_mask, params,
        embed_dim=E, num_heads=NH, mem_n=MEM_N, attn_mask_b=ATTN_MASK_B)
    jax.block_until_ready((h_n, c_n, k_n, v_n))

    h_r, c_r, k_r, v_r = conv_attn_lstm_cell_reference(
        x, h_cur, c_cur, concat_k, concat_v, attn_mask, params,
        embed_dim=E, num_heads=NH, mem_n=MEM_N, attn_mask_b=ATTN_MASK_B)

    assert h_n.shape == (B, E, 1, 1)
    assert c_n.shape == (B, E, 1, 1)
    assert k_n.shape == (B, NH, MEM_N, HD)
    assert v_n.shape == (B, NH, MEM_N, HD)

    for name, got, want in (("h_next", h_n, h_r), ("c_next", c_n, c_r),
                            ("concat_k", k_n, k_r), ("concat_v", v_n, v_r)):
        assert jnp.all(jnp.isfinite(got)), f"{name} has non-finite values"
        assert jnp.allclose(got, want, rtol=1e-4, atol=1e-4), f"{name} mismatch vs reference"

    print("KERNEL_OK")
</pallas_src>

<mosaic_0001>
module attributes {stable_mosaic.version = 11 : i64} {
  func.func @_cell_kernel(%arg0: i32, %arg1: memref<8x96xf32, #tpu.memory_space<vmem>>, %arg2: memref<8x8x64xf32, #tpu.memory_space<vmem>>, %arg3: memref<8x8x8xf32, #tpu.memory_space<vmem>>, %arg4: memref<64x256xf32, #tpu.memory_space<vmem>>, %arg5: memref<1x256xf32, #tpu.memory_space<vmem>>, %arg6: memref<8x64xf32, #tpu.memory_space<vmem>>, %arg7: memref<32x8xf32, #tpu.memory_space<vmem>>, %arg8: memref<8x64xf32, #tpu.memory_space<vmem>>, %arg9: memref<64x32xf32, #tpu.memory_space<vmem>>, %arg10: memref<8x32xf32, #tpu.memory_space<vmem>>, %arg11: memref<8x64xf32, #tpu.memory_space<vmem>>, %arg12: memref<8x8x64xf32, #tpu.memory_space<vmem>>) attributes {dimension_semantics = [#tpu.dimension_semantics<parallel>], iteration_bounds = array<i64: 1>, scalar_prefetch = 0 : i64, scratch_operands = 0 : i64, tpu.core_type = #tpu.core_type<tc>, window_params = [{transform_indices = @transform_0, window_bounds = array<i64: 8, 96>}, {transform_indices = @transform_1, window_bounds = array<i64: 8, 8, 64>}, {transform_indices = @transform_2, window_bounds = array<i64: 8, 8, 8>}, {pipeline_mode = #tpu.pipeline_mode<synchronous>, transform_indices = @transform_3, window_bounds = array<i64: 64, 256>}, {pipeline_mode = #tpu.pipeline_mode<synchronous>, transform_indices = @transform_4, window_bounds = array<i64: 1, 256>}, {pipeline_mode = #tpu.pipeline_mode<synchronous>, transform_indices = @transform_5, window_bounds = array<i64: 8, 64>}, {pipeline_mode = #tpu.pipeline_mode<synchronous>, transform_indices = @transform_6, window_bounds = array<i64: 32, 8>}, {pipeline_mode = #tpu.pipeline_mode<synchronous>, transform_indices = @transform_7, window_bounds = array<i64: 8, 64>}, {pipeline_mode = #tpu.pipeline_mode<synchronous>, transform_indices = @transform_8, window_bounds = array<i64: 64, 32>}, {pipeline_mode = #tpu.pipeline_mode<synchronous>, transform_indices = @transform_9, window_bounds = array<i64: 8, 32>}, {transform_indices = @transform_10, window_bounds = array<i64: 8, 64>}, {transform_indices = @transform_11, window_bounds = array<i64: 8, 8, 64>}]} {
    %c0 = arith.constant 0 : index
    %c0_0 = arith.constant 0 : index
    %0 = vector.load %arg1[%c0, %c0_0] : memref<8x96xf32, #tpu.memory_space<vmem>>, vector<8x96xf32>
    %1 = vector.extract_strided_slice %0 {offsets = [0, 0], sizes = [8, 64], strides = [1, 1]} : vector<8x96xf32> to vector<8x64xf32>
    %2 = vector.extract_strided_slice %0 {offsets = [0, 64], sizes = [8, 32], strides = [1, 1]} : vector<8x96xf32> to vector<8x32xf32>
    %c0_1 = arith.constant 0 : index
    %c0_2 = arith.constant 0 : index
    %3 = vector.load %arg4[%c0_1, %c0_2] : memref<64x256xf32, #tpu.memory_space<vmem>>, vector<64x256xf32>
    %cst = arith.constant dense<0.000000e+00> : vector<8x256xf32>
    %4 = tpu.matmul %1, %3, %cst {dimension_numbers = #tpu.dot_dimension_numbers<[1], [0], [0], [1], [0, 0, 1, 1], [], []>} : vector<8x64xf32>, vector<64x256xf32>, vector<8x256xf32> -> vector<8x256xf32>
    %c0_3 = arith.constant 0 : index
    %c0_4 = arith.constant 0 : index
    %5 = vector.load %arg5[%c0_3, %c0_4] : memref<1x256xf32, #tpu.memory_space<vmem>>, vector<1x256xf32>
    %6 = vector.broadcast %5 : vector<1x256xf32> to vector<8x256xf32>
    %7 = arith.addf %4, %6 : vector<8x256xf32>
    %8 = vector.extract_strided_slice %7 {offsets = [0, 0], sizes = [8, 32], strides = [1, 1]} : vector<8x256xf32> to vector<8x32xf32>
    %9 = arith.negf %8 : vector<8x32xf32>
    %10 = math.exp %9 : vector<8x32xf32>
    %cst_5 = arith.constant 1.000000e+00 : f32
    %11 = vector.broadcast %cst_5 : f32 to vector<8x32xf32>
    %12 = arith.addf %11, %10 : vector<8x32xf32>
    %13 = arith.divf %11, %12 : vector<8x32xf32>
    %14 = vector.extract_strided_slice %7 {offsets = [0, 32], sizes = [8, 32], strides = [1, 1]} : vector<8x256xf32> to vector<8x32xf32>
    %15 = arith.negf %14 : vector<8x32xf32>
    %16 = math.exp %15 : vector<8x32xf32>
    %cst_6 = arith.constant 1.000000e+00 : f32
    %17 = vector.broadcast %cst_6 : f32 to vector<8x32xf32>
    %18 = arith.addf %17, %16 : vector<8x32xf32>
    %19 = arith.divf %17, %18 : vector<8x32xf32>
    %20 = vector.extract_strided_slice %7 {offsets = [0, 64], sizes = [8, 32], strides = [1, 1]} : vector<8x256xf32> to vector<8x32xf32>
    %21 = arith.negf %20 : vector<8x32xf32>
    %22 = math.exp %21 : vector<8x32xf32>
    %cst_7 = arith.constant 1.000000e+00 : f32
    %23 = vector.broadcast %cst_7 : f32 to vector<8x32xf32>
    %24 = arith.addf %23, %22 : vector<8x32xf32>
    %25 = arith.divf %23, %24 : vector<8x32xf32>
    %26 = vector.extract_strided_slice %7 {offsets = [0, 96], sizes = [8, 32], strides = [1, 1]} : vector<8x256xf32> to vector<8x32xf32>
    %27 = math.tanh %26 : vector<8x32xf32>
    %28 = vector.extract_strided_slice %7 {offsets = [0, 128], sizes = [8, 32], strides = [1, 1]} : vector<8x256xf32> to vector<8x32xf32>
    %29 = arith.negf %28 : vector<8x32xf32>
    %30 = math.exp %29 : vector<8x32xf32>
    %cst_8 = arith.constant 1.000000e+00 : f32
    %31 = vector.broadcast %cst_8 : f32 to vector<8x32xf32>
    %32 = arith.addf %31, %30 : vector<8x32xf32>
    %33 = arith.divf %31, %32 : vector<8x32xf32>
    %34 = vector.extract_strided_slice %7 {offsets = [0, 160], sizes = [8, 64], strides = [1, 1]} : vector<8x256xf32> to vector<8x64xf32>
    %35 = vector.extract_strided_slice %7 {offsets = [0, 224], sizes = [8, 32], strides = [1, 1]} : vector<8x256xf32> to vector<8x32xf32>
    %cst_9 = arith.constant 5.000000e-01 : f32
    %36 = vector.broadcast %cst_9 : f32 to vector<8x32xf32>
    %37 = arith.mulf %35, %36 : vector<8x32xf32>
    %c0_10 = arith.constant 0 : index
    %c0_11 = arith.constant 0 : index
    %c0_12 = arith.constant 0 : index
    %38 = vector.load %arg2[%c0_10, %c0_11, %c0_12] : memref<8x8x64xf32, #tpu.memory_space<vmem>>, vector<8x8x64xf32>
    %39 = vector.extract_strided_slice %38 {offsets = [1, 0, 0], sizes = [7, 8, 64], strides = [1, 1, 1]} : vector<8x8x64xf32> to vector<7x8x64xf32>
    %40 = vector.shape_cast %34 : vector<8x64xf32> to vector<1x8x64xf32>
    %41 = tpu.concatenate %39, %40 in 0 : vector<7x8x64xf32>, vector<1x8x64xf32> -> vector<8x8x64xf32>
    %c0_13 = arith.constant 0 : index
    %c0_14 = arith.constant 0 : index
    %42 = vector.load %arg6[%c0_13, %c0_14] : memref<8x64xf32, #tpu.memory_space<vmem>>, vector<8x64xf32>
    %43 = vector.shape_cast %42 : vector<8x64xf32> to vector<8x1x64xf32>
    %44 = vector.broadcast %43 : vector<8x1x64xf32> to vector<8x8x64xf32>
    %45 = arith.addf %41, %44 : vector<8x8x64xf32>
    %c0_15 = arith.constant 0 : index
    %c0_16 = arith.constant 0 : index
    %c0_17 = arith.constant 0 : index
    %46 = vector.load %arg12[%c0_15, %c0_16, %c0_17] : memref<8x8x64xf32, #tpu.memory_space<vmem>>, vector<8x8x64xf32>
    tpu.vector_store %arg12[%c0_15, %c0_16, %c0_17], %45 {strides = array<i32>} : memref<8x8x64xf32, #tpu.memory_space<vmem>>, vector<8x8x64xf32>,
    %47 = vector.extract_strided_slice %45 {offsets = [0, 0, 0], sizes = [8, 8, 32], strides = [1, 1, 1]} : vector<8x8x64xf32> to vector<8x8x32xf32>
    %48 = vector.shape_cast %37 : vector<8x32xf32> to vector<1x8x32xf32>
    %49 = vector.broadcast %48 : vector<1x8x32xf32> to vector<8x8x32xf32>
    %50 = arith.mulf %47, %49 : vector<8x8x32xf32>
    %51 = vector.shape_cast %50 : vector<8x8x32xf32> to vector<64x32xf32>
    %c0_18 = arith.constant 0 : index
    %c0_19 = arith.constant 0 : index
    %52 = vector.load %arg7[%c0_18, %c0_19] : memref<32x8xf32, #tpu.memory_space<vmem>>, vector<32x8xf32>
    %cst_20 = arith.constant dense<0.000000e+00> : vector<64x8xf32>
    %53 = tpu.matmul %51, %52, %cst_20 {dimension_numbers = #tpu.dot_dimension_numbers<[1], [0], [0], [1], [0, 0, 1, 1], [], []>} : vector<64x32xf32>, vector<32x8xf32>, vector<64x8xf32> -> vector<64x8xf32>
    %54 = vector.shape_cast %53 : vector<64x8xf32> to vector<8x8x8xf32>
    %c0_21 = arith.constant 0 : index
    %c0_22 = arith.constant 0 : index
    %c0_23 = arith.constant 0 : index
    %55 = vector.load %arg3[%c0_21, %c0_22, %c0_23] : memref<8x8x8xf32, #tpu.memory_space<vmem>>, vector<8x8x8xf32>
    %56 = arith.addf %54, %55 : vector<8x8x8xf32>
    %cst_24 = arith.constant dense<0xFF800000> : vector<8x8xf32>
    %57 = vector.multi_reduction <maximumf>, %56, %cst_24 [0] : vector<8x8x8xf32> to vector<8x8xf32>
    %58 = vector.shape_cast %57 : vector<8x8xf32> to vector<1x8x8xf32>
    %59 = vector.broadcast %58 : vector<1x8x8xf32> to vector<8x8x8xf32>
    %60 = arith.subf %56, %59 : vector<8x8x8xf32>
    %61 = math.exp %60 : vector<8x8x8xf32>
    %cst_25 = arith.constant dense<0.000000e+00> : vector<8x8xf32>
    %62 = vector.multi_reduction <add>, %61, %cst_25 [0] : vector<8x8x8xf32> to vector<8x8xf32>
    %63 = vector.shape_cast %62 : vector<8x8xf32> to vector<1x8x8xf32>
    %64 = vector.broadcast %63 : vector<1x8x8xf32> to vector<8x8x8xf32>
    %65 = arith.divf %61, %64 : vector<8x8x8xf32>
    %66 = vector.shape_cast %65 : vector<8x8x8xf32> to vector<64x8xf32>
    %c0_26 = arith.constant 0 : index
    %c0_27 = arith.constant 0 : index
    %67 = vector.load %arg8[%c0_26, %c0_27] : memref<8x64xf32, #tpu.memory_space<vmem>>, vector<8x64xf32>
    %cst_28 = arith.constant dense<0.000000e+00> : vector<64x64xf32>
    %68 = tpu.matmul %66, %67, %cst_28 {dimension_numbers = #tpu.dot_dimension_numbers<[1], [0], [0], [1], [0, 0, 1, 1], [], []>} : vector<64x8xf32>, vector<8x64xf32>, vector<64x64xf32> -> vector<64x64xf32>
    %69 = vector.shape_cast %68 : vector<64x64xf32> to vector<8x8x64xf32>
    %70 = arith.mulf %69, %45 : vector<8x8x64xf32>
    %cst_29 = arith.constant dense<0.000000e+00> : vector<8x64xf32>
    %71 = vector.multi_reduction <add>, %70, %cst_29 [0] : vector<8x8x64xf32> to vector<8x64xf32>
    %c0_30 = arith.constant 0 : index
    %c0_31 = arith.constant 0 : index
    %72 = vector.load %arg10[%c0_30, %c0_31] : memref<8x32xf32, #tpu.memory_space<vmem>>, vector<8x32xf32>
    %c0_32 = arith.constant 0 : index
    %c0_33 = arith.constant 0 : index
    %73 = vector.load %arg9[%c0_32, %c0_33] : memref<64x32xf32, #tpu.memory_space<vmem>>, vector<64x32xf32>
    %cst_34 = arith.constant dense<0.000000e+00> : vector<8x32xf32>
    %74 = tpu.matmul %71, %73, %cst_34 {dimension_numbers = #tpu.dot_dimension_numbers<[1], [0], [0], [1], [0, 0, 1, 1], [], []>} : vector<8x64xf32>, vector<64x32xf32>, vector<8x32xf32> -> vector<8x32xf32>
    %75 = vector.extract_strided_slice %72 {offsets = [0, 0], sizes = [1, 32], strides = [1, 1]} : vector<8x32xf32> to vector<1x32xf32>
    %76 = vector.broadcast %75 : vector<1x32xf32> to vector<8x32xf32>
    %77 = arith.addf %74, %76 : vector<8x32xf32>
    %78 = vector.extract_strided_slice %0 {offsets = [0, 0], sizes = [8, 32], strides = [1, 1]} : vector<8x96xf32> to vector<8x32xf32>
    %79 = arith.addf %77, %78 : vector<8x32xf32>
    %cst_35 = arith.constant dense<0.000000e+00> : vector<8xf32>
    %80 = vector.multi_reduction <add>, %79, %cst_35 [1] : vector<8x32xf32> to vector<8xf32>
    %81 = vector.shape_cast %80 : vector<8xf32> to vector<8x1xf32>
    %cst_36 = arith.constant 3.200000e+01 : f32
    %82 = vector.broadcast %cst_36 : f32 to vector<8x1xf32>
    %83 = arith.divf %81, %82 : vector<8x1xf32>
    %84 = vector.broadcast %83 : vector<8x1xf32> to vector<8x32xf32>
    %85 = arith.subf %79, %84 : vector<8x32xf32>
    %86 = arith.mulf %85, %85 : vector<8x32xf32>
    %cst_37 = arith.constant dense<0.000000e+00> : vector<8xf32>
    %87 = vector.multi_reduction <add>, %86, %cst_37 [1] : vector<8x32xf32> to vector<8xf32>
    %88 = vector.shape_cast %87 : vector<8xf32> to vector<8x1xf32>
    %cst_38 = arith.constant 3.200000e+01 : f32
    %89 = vector.broadcast %cst_38 : f32 to vector<8x1xf32>
    %90 = arith.divf %88, %89 : vector<8x1xf32>
    %91 = vector.broadcast %83 : vector<8x1xf32> to vector<8x32xf32>
    %92 = arith.subf %79, %91 : vector<8x32xf32>
    %cst_39 = arith.constant 9.99999974E-6 : f32
    %93 = vector.broadcast %cst_39 : f32 to vector<8x1xf32>
    %94 = arith.addf %90, %93 : vector<8x1xf32>
    %95 = math.rsqrt %94 : vector<8x1xf32>
    %96 = vector.broadcast %95 : vector<8x1xf32> to vector<8x32xf32>
    %97 = arith.mulf %92, %96 : vector<8x32xf32>
    %98 = vector.extract_strided_slice %72 {offsets = [1, 0], sizes = [1, 32], strides = [1, 1]} : vector<8x32xf32> to vector<1x32xf32>
    %99 = vector.broadcast %98 : vector<1x32xf32> to vector<8x32xf32>
    %100 = arith.mulf %97, %99 : vector<8x32xf32>
    %101 = vector.extract_strided_slice %72 {offsets = [2, 0], sizes = [1, 32], strides = [1, 1]} : vector<8x32xf32> to vector<1x32xf32>
    %102 = vector.broadcast %101 : vector<1x32xf32> to vector<8x32xf32>
    %103 = arith.addf %100, %102 : vector<8x32xf32>
    %104 = arith.mulf %19, %2 : vector<8x32xf32>
    %105 = arith.mulf %13, %27 : vector<8x32xf32>
    %106 = arith.addf %104, %105 : vector<8x32xf32>
    %107 = math.tanh %103 : vector<8x32xf32>
    %108 = arith.mulf %33, %107 : vector<8x32xf32>
    %109 = arith.addf %106, %108 : vector<8x32xf32>
    %110 = math.tanh %109 : vector<8x32xf32>
    %111 = arith.mulf %25, %110 : vector<8x32xf32>
    %112 = tpu.concatenate %111, %109 in 1 : vector<8x32xf32>, vector<8x32xf32> -> vector<8x64xf32>
    %c0_40 = arith.constant 0 : index
    %c0_41 = arith.constant 0 : index
    %113 = vector.load %arg11[%c0_40, %c0_41] : memref<8x64xf32, #tpu.memory_space<vmem>>, vector<8x64xf32>
    tpu.vector_store %arg11[%c0_40, %c0_41], %112 {strides = array<i32>} : memref<8x64xf32, #tpu.memory_space<vmem>>, vector<8x64xf32>,
    return
  }
  func.func @transform_0(%arg0: i32) -> (i32, i32) {
    %c0_i32 = arith.constant 0 : i32
    %c0_i32_0 = arith.constant 0 : i32
    return %arg0, %c0_i32 : i32, i32
  }
  func.func @transform_1(%arg0: i32) -> (i32, i32, i32) {
    %c0_i32 = arith.constant 0 : i32
    %c0_i32_0 = arith.constant 0 : i32
    %c0_i32_1 = arith.constant 0 : i32
    return %c0_i32, %arg0, %c0_i32_0 : i32, i32, i32
  }
  func.func @transform_2(%arg0: i32) -> (i32, i32, i32) {
    %c0_i32 = arith.constant 0 : i32
    %c0_i32_0 = arith.constant 0 : i32
    %c0_i32_1 = arith.constant 0 : i32
    return %c0_i32, %arg0, %c0_i32_0 : i32, i32, i32
  }
  func.func @transform_3(%arg0: i32) -> (i32, i32) {
    %c0_i32 = arith.constant 0 : i32
    %c0_i32_0 = arith.constant 0 : i32
    %c0_i32_1 = arith.constant 0 : i32
    return %c0_i32, %c0_i32_0 : i32, i32
  }
  func.func @transform_4(%arg0: i32) -> (i32, i32) {
    %c0_i32 = arith.constant 0 : i32
    %c0_i32_0 = arith.constant 0 : i32
    %c0_i32_1 = arith.constant 0 : i32
    return %c0_i32, %c0_i32_0 : i32, i32
  }
  func.func @transform_5(%arg0: i32) -> (i32, i32) {
    %c0_i32 = arith.constant 0 : i32
    %c0_i32_0 = arith.constant 0 : i32
    %c0_i32_1 = arith.constant 0 : i32
    return %c0_i32, %c0_i32_0 : i32, i32
  }
  func.func @transform_6(%arg0: i32) -> (i32, i32) {
    %c0_i32 = arith.constant 0 : i32
    %c0_i32_0 = arith.constant 0 : i32
    %c0_i32_1 = arith.constant 0 : i32
    return %c0_i32, %c0_i32_0 : i32, i32
  }
  func.func @transform_7(%arg0: i32) -> (i32, i32) {
    %c0_i32 = arith.constant 0 : i32
    %c0_i32_0 = arith.constant 0 : i32
    %c0_i32_1 = arith.constant 0 : i32
    return %c0_i32, %c0_i32_0 : i32, i32
  }
  func.func @transform_8(%arg0: i32) -> (i32, i32) {
    %c0_i32 = arith.constant 0 : i32
    %c0_i32_0 = arith.constant 0 : i32
    %c0_i32_1 = arith.constant 0 : i32
    return %c0_i32, %c0_i32_0 : i32, i32
  }
  func.func @transform_9(%arg0: i32) -> (i32, i32) {
    %c0_i32 = arith.constant 0 : i32
    %c0_i32_0 = arith.constant 0 : i32
    %c0_i32_1 = arith.constant 0 : i32
    return %c0_i32, %c0_i32_0 : i32, i32
  }
  func.func @transform_10(%arg0: i32) -> (i32, i32) {
    %c0_i32 = arith.constant 0 : i32
    %c0_i32_0 = arith.constant 0 : i32
    return %arg0, %c0_i32 : i32, i32
  }
  func.func @transform_11(%arg0: i32) -> (i32, i32, i32) {
    %c0_i32 = arith.constant 0 : i32
    %c0_i32_0 = arith.constant 0 : i32
    %c0_i32_1 = arith.constant 0 : i32
    return %c0_i32, %arg0, %c0_i32_0 : i32, i32, i32
  }
}

</mosaic_0001>

<llo_original>
// kernel: tpu_custom_call.1
$region0: #{tpu_custom_call.1}
  #allocation0 [shape = 'u32[]', space=smem, size = 0x4, offset = 0x4, fixed_abs, tag = 'smem constant byte address 0x4 - core index']
  #allocation1 [shape = 'u32[72,128]{1,0:T(1,128)}', space=vmem, size = 0x9000, scoped, tag = 'internal scratch']
  %s0 = inlined_call_operand.vmem [shape: f32[8,96], index: 0, kind: input, shape index: {}]
  %s1 = inlined_call_operand.vmem [shape: f32[8,8,64], index: 1, kind: input, shape index: {}]
  %s2 = inlined_call_operand.hbm [shape: f32[8,8,8], index: 2, kind: input, shape index: {}]
  %s3 = inlined_call_operand.hbm [shape: f32[64,256], index: 3, kind: input, shape index: {}]
  %s4 = inlined_call_operand.vmem [shape: f32[1,256], index: 4, kind: input, shape index: {}]
  %s5 = inlined_call_operand.vmem [shape: f32[8,64], index: 5, kind: input, shape index: {}]
  %s6 = inlined_call_operand.vmem [shape: f32[32,8], index: 6, kind: input, shape index: {}]
  %s7 = inlined_call_operand.vmem [shape: f32[8,64], index: 7, kind: input, shape index: {}]
  %s8 = inlined_call_operand.vmem [shape: f32[64,32], index: 8, kind: input, shape index: {}]
  %s9 = inlined_call_operand.vmem [shape: f32[8,32], index: 9, kind: input, shape index: {}]
  %s10 = inlined_call_operand.hbm [shape: f32[8,64], index: 10, kind: output, shape index: {0}]
  %s11 = inlined_call_operand.hbm [shape: f32[8,8,64], index: 11, kind: output, shape index: {1}]
  %12 = xla_tuple %s10, %s11
  %s13 = sld [smem:[#allocation0]]
  $region66: #{tpu_custom_call.1} parent=0
    _
  %s15 = ssub.s32 1, %s13
  %s16 = scalar_select 0, %s15, %s13
  $region1: #{tpu_custom_call.1} parent=0
    #allocation2 [shape = 'u8[32768]{0}', space=vmem, size = 0x8000, scoped, tag = 'input window, operand 2, single buffered']
    #allocation3 [shape = 's32[1]{0}', space=sflag, size = 0x4, scoped, tag = 'scoped memory for tpu_custom_call.1']
    #allocation4 [shape = 's32[1]{0}', space=sflag, size = 0x4, scoped, tag = 'scoped memory for tpu_custom_call.1']
    #allocation5 [shape = 'u8[65536]{0}', space=vmem, size = 0x10000, scoped, tag = 'input window, operand 3, single buffered']
    #allocation6 [shape = 's32[1]{0}', space=sflag, size = 0x4, scoped, tag = 'scoped memory for tpu_custom_call.1']
    #allocation7 [shape = 'u8[4096]{0}', space=vmem, size = 0x1000, scoped, tag = 'output window, operand 0, single buffered']
    #allocation8 [shape = 'u8[32768]{0}', space=vmem, size = 0x8000, scoped, tag = 'output window, operand 1, single buffered']
    #allocation9 [shape = 's32[1]{0}', space=sflag, size = 0x4, scoped, tag = 'scoped memory for tpu_custom_call.1']
    %17 = vsyncpa [#allocation3], 0
    %18 = vsyncpa [#allocation6], 0
    %19 = vsyncpa [#allocation4], 0
    %20 = vsyncpa [#allocation9], 0
    // Predicated region
    $region2: #{tpu_custom_call.1} parent=1 // pred_check
      _
    $region3: #{tpu_custom_call.1} parent=1 // pred_check_branch
      %22 = sbr.rel (0) target = $region5
    $region4: #{tpu_custom_call.1} parent=1 // pred_region
      _
    $region5: #{tpu_custom_call.1} parent=1 // pred_fallthru
      _
    // Predicated region
    $region6: #{tpu_custom_call.1} parent=1 // pred_check
      _
    $region7: #{tpu_custom_call.1} parent=1 // pred_check_branch
      %24 = sbr.rel (0) target = $region9
    $region8: #{tpu_custom_call.1} parent=1 // pred_region
      _
    $region9: #{tpu_custom_call.1} parent=1 // pred_fallthru
      _
    // Predicated region
    $region10: #{tpu_custom_call.1} parent=1 // pred_check
      _
    $region11: #{tpu_custom_call.1} parent=1 // pred_check_branch
      %26 = sbr.rel (0) target = $region13
    $region12: #{tpu_custom_call.1} parent=1 // pred_region
      %28 = vsyncadd [#allocation3], 0
      %s29 = sshll.u32 %s2, 4
      %s30 = int_to_ptr.hbm [resolvable:$true] %s29
      %s31 = sshll.u32 [#allocation2], 4
      %s32 = int_to_ptr.vmem [resolvable:$true] %s31
      %37 = dma.hbm_to_vmem [thread:$0]  %s30, 1024, %s32, [#allocation3], 128, 128, 8
    $region13: #{tpu_custom_call.1} parent=1 // pred_fallthru
      _
    // Predicated region
    $region14: #{tpu_custom_call.1} parent=1 // pred_check
      _
    $region15: #{tpu_custom_call.1} parent=1 // pred_check_branch
      %39 = sbr.rel (0) target = $region17
    $region16: #{tpu_custom_call.1} parent=1 // pred_region
      %41 = vsyncadd [#allocation6], 0
      %s42 = sshll.u32 %s3, 4
      %s43 = int_to_ptr.hbm [resolvable:$true] %s42
      %s44 = sshll.u32 [#allocation5], 4
      %s45 = int_to_ptr.vmem [resolvable:$true] %s44
      %50 = dma.hbm_to_vmem [thread:$0]  %s43, 2048, %s45, [#allocation6], 256, 256, 16
    $region17: #{tpu_custom_call.1} parent=1 // pred_fallthru
      _
    // Predicated region
    $region18: #{tpu_custom_call.1} parent=1 // pred_check
      _
    $region19: #{tpu_custom_call.1} parent=1 // pred_check_branch
      %52 = sbr.rel (0) target = $region21
    $region20: #{tpu_custom_call.1} parent=1 // pred_region
      _
    $region21: #{tpu_custom_call.1} parent=1 // pred_fallthru
      _
    // Predicated region
    $region22: #{tpu_custom_call.1} parent=1 // pred_check
      _
    $region23: #{tpu_custom_call.1} parent=1 // pred_check_branch
      %54 = sbr.rel (0) target = $region25
    $region24: #{tpu_custom_call.1} parent=1 // pred_region
      _
    $region25: #{tpu_custom_call.1} parent=1 // pred_fallthru
      _
    // Predicated region
    $region26: #{tpu_custom_call.1} parent=1 // pred_check
      _
    $region27: #{tpu_custom_call.1} parent=1 // pred_check_branch
      %56 = sbr.rel (0) target = $region29
    $region28: #{tpu_custom_call.1} parent=1 // pred_region
      _
    $region29: #{tpu_custom_call.1} parent=1 // pred_fallthru
      _
    // Predicated region
    $region30: #{tpu_custom_call.1} parent=1 // pred_check
      _
    $region31: #{tpu_custom_call.1} parent=1 // pred_check_branch
      %58 = sbr.rel (0) target = $region33
    $region32: #{tpu_custom_call.1} parent=1 // pred_region
      _
    $region33: #{tpu_custom_call.1} parent=1 // pred_fallthru
      _
    // Predicated region
    $region34: #{tpu_custom_call.1} parent=1 // pred_check
      _
    $region35: #{tpu_custom_call.1} parent=1 // pred_check_branch
      %60 = sbr.rel (0) target = $region37
    $region36: #{tpu_custom_call.1} parent=1 // pred_region
      _
    $region37: #{tpu_custom_call.1} parent=1 // pred_fallthru
      _
    // Predicated region
    $region38: #{tpu_custom_call.1} parent=1 // pred_check
      _
    $region39: #{tpu_custom_call.1} parent=1 // pred_check_branch
      %62 = sbr.rel (0) target = $region41
    $region40: #{tpu_custom_call.1} parent=1 // pred_region
      _
    $region41: #{tpu_custom_call.1} parent=1 // pred_fallthru
      _
    // Predicated region
    $region42: #{tpu_custom_call.1} parent=1 // pred_check
      _
    $region43: #{tpu_custom_call.1} parent=1 // pred_check_branch
      %64 = sbr.rel (0) target = $region45
    $region44: #{tpu_custom_call.1} parent=1 // pred_region
      %66 = dma.done [#allocation3], 1024
    $region45: #{tpu_custom_call.1} parent=1 // pred_fallthru
      _
    // Predicated region
    $region46: #{tpu_custom_call.1} parent=1 // pred_check
      _
    $region47: #{tpu_custom_call.1} parent=1 // pred_check_branch
      %68 = sbr.rel (0) target = $region49
    $region48: #{tpu_custom_call.1} parent=1 // pred_region
      %70 = dma.done [#allocation6], 2048
    $region49: #{tpu_custom_call.1} parent=1 // pred_fallthru
      _
    %v71 = vld [vmem:[%s0] sm:$0xff]
    %v72 = vld [vmem:[#allocation5] sm:$0xff]
    %v73 = vld [vmem:[#allocation5 + $0x8] sm:$0xff]
    %v74 = vld [vmem:[#allocation5 + $0x10] sm:$0xff]
    %v75 = vld [vmem:[#allocation5 + $0x18] sm:$0xff]
    %v76 = vld [vmem:[#allocation5 + $0x20] sm:$0xff]
    %v77 = vld [vmem:[#allocation5 + $0x28] sm:$0xff]
    %v78 = vld [vmem:[#allocation5 + $0x30] sm:$0xff]
    %v79 = vld [vmem:[#allocation5 + $0x38] sm:$0xff]
    %v80 = vld [vmem:[#allocation5 + $0x40] sm:$0xff]
    %v81 = vld [vmem:[#allocation5 + $0x48] sm:$0xff]
    %v82 = vld [vmem:[#allocation5 + $0x50] sm:$0xff]
    %v83 = vld [vmem:[#allocation5 + $0x58] sm:$0xff]
    %v84 = vld [vmem:[#allocation5 + $0x60] sm:$0xff]
    %v85 = vld [vmem:[#allocation5 + $0x68] sm:$0xff]
    %v86 = vld [vmem:[#allocation5 + $0x70] sm:$0xff]
    %v87 = vld [vmem:[#allocation5 + $0x78] sm:$0xff]
    %v88 = vld [vmem:[%s4] sm:$0x3]
    %v90 = vperm.slane %v88, 0
    %v91 = vperm.slane %v88, 1
    %vm94 = vcmask 523264
    %v96 = vsel %vm94, %v71, 0
    %98 = vmatpush.msra.mxu0 0.0
    %99 = vmatpush.msra.mxu0 0.0
    %100 = vmatpush.msra.mxu0 0.0
    %101 = vmatpush.msra.mxu0 0.0
    %102 = vmatpush.msra.mxu0 0.0
    %103 = vmatpush.msra.mxu0 0.0
    %104 = vmatpush.msra.mxu0 0.0
    %105 = vmatpush.msra.mxu0 0.0
    %106 = vmatpush.msra.mxu0 %v86
    %107 = vmatpush.msra.mxu0 %v84
    %108 = vmatpush.msra.mxu0 %v82
    %109 = vmatpush.msra.mxu0 %v80
    %110 = vmatpush.msra.mxu0 %v78
    %111 = vmatpush.msra.mxu0 %v76
    %112 = vmatpush.msra.mxu0 %v74
    %113 = vmatpush.msra.mxu0 %v72
    %114 = vmatmul.f32.gmra.mxu0 %v96
    %v115 = vpop.f32.mrf.mxu0
    %v116 = vadd.f32 %v90, %v115
    %117 = vdwg.mxu0
    %118 = vmatpush.msra.mxu0 0.0
    %119 = vmatpush.msra.mxu0 0.0
    %120 = vmatpush.msra.mxu0 0.0
    %121 = vmatpush.msra.mxu0 0.0
    %122 = vmatpush.msra.mxu0 0.0
    %123 = vmatpush.msra.mxu0 0.0
    %124 = vmatpush.msra.mxu0 0.0
    %125 = vmatpush.msra.mxu0 0.0
    %126 = vmatpush.msra.mxu0 %v87
    %127 = vmatpush.msra.mxu0 %v85
    %128 = vmatpush.msra.mxu0 %v83
    %129 = vmatpush.msra.mxu0 %v81
    %130 = vmatpush.msra.mxu0 %v79
    %131 = vmatpush.msra.mxu0 %v77
    %132 = vmatpush.msra.mxu0 %v75
    %133 = vmatpush.msra.mxu0 %v73
    %134 = vmatmul.f32.gmra.mxu0 %v96
    %v135 = vpop.f32.mrf.mxu0
    %v136 = vadd.f32 %v91, %v135
    %137 = vdwg.mxu0
    %v138 = vxor.u32 %v116, 2147483648
    %v139 = vmul.f32 %v138, 1.442695
    %v140 = vpow.pop %v139
    %v141 = vadd.f32 %v140, 1.0
    %v142 = vrcp.pop %v141
    %v143 = vmul.f32 %v141, %v142
    %v144 = vsub.f32 1.0, %v143
    %v145 = vmul.f32 %v142, %v144
    %v146 = vadd.f32 %v142, %v145
    %vm147 = vweird.f32 %v141
    %vm148 = vweird.f32 %v142
    %vm149 = vmor %vm147, %vm148
    %v150 = vsel %vm149, %v142, %v146
    %v151 = vand.u32 2147483647, %v141
    %vm152 = vcmp.eq.f32.partialorder %v151, 8.507059e+37
    %v153 = vand.u32 %v141, 2147483648
    %v154 = vor.u32 1.1754944e-38, %v153
    %v155 = vsel %vm152, %v154, %v150
    %v156 = vmul.f32 1.0, %v155
    %v157 = vtanh.pop %v116
    %v158 = vxor.u32 %v136, 2147483648
    %v159 = vmul.f32 %v158, 1.442695
    %v160 = vpow.pop %v159
    %v161 = vadd.f32 %v160, 1.0
    %v162 = vrcp.pop %v161
    %v163 = vmul.f32 %v161, %v162
    %v164 = vsub.f32 1.0, %v163
    %v165 = vmul.f32 %v162, %v164
    %v166 = vadd.f32 %v162, %v165
    %vm167 = vweird.f32 %v161
    %vm168 = vweird.f32 %v162
    %vm169 = vmor %vm167, %vm168
    %v170 = vsel %vm169, %v162, %v166
    %v171 = vand.u32 2147483647, %v161
    %vm172 = vcmp.eq.f32.partialorder %v171, 8.507059e+37
    %v173 = vand.u32 %v161, 2147483648
    %v174 = vor.u32 1.1754944e-38, %v173
    %v175 = vsel %vm172, %v174, %v170
    %v176 = vmul.f32 1.0, %v175
    %v177 = vmul.f32 %v136, 0.5
    %v178 = vld [vmem:[%s1 + $0x8] sm:$0xff]
    %v179 = vld [vmem:[%s1 + $0x10] sm:$0xff]
    %v180 = vld [vmem:[%s1 + $0x18] sm:$0xff]
    %v181 = vld [vmem:[%s1 + $0x20] sm:$0xff]
    %v182 = vld [vmem:[%s1 + $0x28] sm:$0xff]
    %v183 = vld [vmem:[%s1 + $0x30] sm:$0xff]
    %v184 = vld [vmem:[%s1 + $0x38] sm:$0xff]
    %186 = vrot.lane.b32.xlu0 %v136, 96
    %v187 = vpop.permute.xlu0 %186
    %v189 = vld [vmem:[%s5] sm:$0xff]
    %v191 = vrot.slane %v189, 1
    %v192 = vrot.slane %v189, 2
    %v193 = vrot.slane %v189, 3
    %v194 = vrot.slane %v189, 4
    %v195 = vrot.slane %v189, 5
    %v196 = vrot.slane %v189, 6
    %v197 = vrot.slane %v189, 7
    %v198 = vperm.slane %v189, 0
    %v199 = vperm.slane %v191, 0
    %v200 = vperm.slane %v192, 0
    %v201 = vperm.slane %v193, 0
    %v202 = vperm.slane %v194, 0
    %v203 = vperm.slane %v195, 0
    %v204 = vperm.slane %v196, 0
    %v205 = vperm.slane %v197, 0
    %v214 = vadd.f32 %v178, %v198
    %v215 = vadd.f32 %v179, %v199
    %v216 = vadd.f32 %v180, %v200
    %v217 = vadd.f32 %v181, %v201
    %v218 = vadd.f32 %v182, %v202
    %v219 = vadd.f32 %v183, %v203
    %v220 = vadd.f32 %v184, %v204
    %v221 = vadd.f32 %v187, %v205
    %222 = vst.msk [vmem:[#allocation8] sm:$0xff] %vm94, %v214
    %223 = vst.msk [vmem:[#allocation8 + $0x8] sm:$0xff] %vm94, %v215
    %224 = vst.msk [vmem:[#allocation8 + $0x10] sm:$0xff] %vm94, %v216
    %225 = vst.msk [vmem:[#allocation8 + $0x18] sm:$0xff] %vm94, %v217
    %226 = vst.msk [vmem:[#allocation8 + $0x20] sm:$0xff] %vm94, %v218
    %227 = vst.msk [vmem:[#allocation8 + $0x28] sm:$0xff] %vm94, %v219
    %228 = vst.msk [vmem:[#allocation8 + $0x30] sm:$0xff] %vm94, %v220
    %229 = vst.msk [vmem:[#allocation8 + $0x38] sm:$0xff] %vm94, %v221
    %231 = vrot.lane.b32.xlu0 %v177, 32
    %v232 = vpop.permute.xlu0 %231
    %v234 = vmul.f32 %v214, %v232
    %v235 = vmul.f32 %v215, %v232
    %v236 = vmul.f32 %v216, %v232
    %v237 = vmul.f32 %v217, %v232
    %v238 = vmul.f32 %v218, %v232
    %v239 = vmul.f32 %v219, %v232
    %v240 = vmul.f32 %v220, %v232
    %v241 = vmul.f32 %v221, %v232
    %v242 = vld [vmem:[%s6] sm:$0xff]
    %v243 = vld [vmem:[%s6 + $0x8] sm:$0xff]
    %v244 = vld [vmem:[%s6 + $0x10] sm:$0xff]
    %v245 = vld [vmem:[%s6 + $0x18] sm:$0xff]
    %vm246 = vcmask 261120
    %v248 = vsel %vm246, %v234, 0
    %v251 = vsel %vm246, %v235, 0
    %v254 = vsel %vm246, %v236, 0
    %v257 = vsel %vm246, %v237, 0
    %v260 = vsel %vm246, %v238, 0
    %v263 = vsel %vm246, %v239, 0
    %v266 = vsel %vm246, %v240, 0
    %v269 = vsel %vm246, %v241, 0
    %271 = vmatpush.msra.mxu0 0.0
    %272 = vmatpush.msra.mxu0 0.0
    %273 = vmatpush.msra.mxu0 0.0
    %274 = vmatpush.msra.mxu0 0.0
    %275 = vmatpush.msra.mxu0 0.0
    %276 = vmatpush.msra.mxu0 0.0
    %277 = vmatpush.msra.mxu0 0.0
    %278 = vmatpush.msra.mxu0 0.0
    %279 = vmatpush.msra.mxu0 0.0
    %280 = vmatpush.msra.mxu0 0.0
    %281 = vmatpush.msra.mxu0 0.0
    %282 = vmatpush.msra.mxu0 0.0
    %283 = vmatpush.msra.mxu0 %v245
    %284 = vmatpush.msra.mxu0 %v244
    %285 = vmatpush.msra.mxu0 %v243
    %286 = vmatpush.msra.mxu0 %v242
    %287 = vmatmul.f32.gmra.mxu0 %v248
    %v288 = vpop.f32.mrf.mxu0
    %v289 = vadd.f32 0.0, %v288
    %290 = vmatmul.f32.gmra.mxu0 %v251
    %v291 = vpop.f32.mrf.mxu0
    %v292 = vadd.f32 0.0, %v291
    %293 = vmatmul.f32.gmra.mxu0 %v254
    %v294 = vpop.f32.mrf.mxu0
    %v295 = vadd.f32 0.0, %v294
    %296 = vmatmul.f32.gmra.mxu0 %v257
    %v297 = vpop.f32.mrf.mxu0
    %v298 = vadd.f32 0.0, %v297
    %299 = vmatmul.f32.gmra.mxu0 %v260
    %v300 = vpop.f32.mrf.mxu0
    %v301 = vadd.f32 0.0, %v300
    %302 = vmatmul.f32.gmra.mxu0 %v263
    %v303 = vpop.f32.mrf.mxu0
    %v304 = vadd.f32 0.0, %v303
    %305 = vmatmul.f32.gmra.mxu0 %v266
    %v306 = vpop.f32.mrf.mxu0
    %v307 = vadd.f32 0.0, %v306
    %308 = vmatmul.f32.gmra.mxu0 %v269
    %v309 = vpop.f32.mrf.mxu0
    %v310 = vadd.f32 0.0, %v309
    %311 = vdwg.mxu0
    %v312 = vld [vmem:[#allocation2] sm:$0xff]
    %v313 = vld [vmem:[#allocation2 + $0x8] sm:$0xff]
    %v314 = vld [vmem:[#allocation2 + $0x10] sm:$0xff]
    %v315 = vld [vmem:[#allocation2 + $0x18] sm:$0xff]
    %v316 = vld [vmem:[#allocation2 + $0x20] sm:$0xff]
    %v317 = vld [vmem:[#allocation2 + $0x28] sm:$0xff]
    %v318 = vld [vmem:[#allocation2 + $0x30] sm:$0xff]
    %v319 = vld [vmem:[#allocation2 + $0x38] sm:$0xff]
    %v320 = vadd.f32 %v289, %v312
    %v321 = vadd.f32 %v292, %v313
    %v322 = vadd.f32 %v295, %v314
    %v323 = vadd.f32 %v298, %v315
    %v324 = vadd.f32 %v301, %v316
    %v325 = vadd.f32 %v304, %v317
    %v326 = vadd.f32 %v307, %v318
    %v327 = vadd.f32 %v310, %v319
    %vm328 = vcmask 64512
    %v329 = vsel %vm328, %v320, -inf
    %v330 = vsel %vm328, %v321, -inf
    %v331 = vsel %vm328, %v322, -inf
    %v332 = vsel %vm328, %v323, -inf
    %v333 = vsel %vm328, %v324, -inf
    %v334 = vmax.f32 %v329, %v333
    %v335 = vsel %vm328, %v325, -inf
    %v336 = vmax.f32 %v330, %v335
    %v337 = vsel %vm328, %v326, -inf
    %v338 = vmax.f32 %v331, %v337
    %v339 = vsel %vm328, %v327, -inf
    %v340 = vmax.f32 %v332, %v339
    %v341 = vmax.f32 %v334, %v336
    %v342 = vmax.f32 %v338, %v340
    %v343 = vmax.f32 %v341, %v342
    %v344 = vsub.f32 %v320, %v343
    %v345 = vsub.f32 %v321, %v343
    %v346 = vsub.f32 %v322, %v343
    %v347 = vsub.f32 %v323, %v343
    %v348 = vsub.f32 %v324, %v343
    %v349 = vsub.f32 %v325, %v343
    %v350 = vsub.f32 %v326, %v343
    %v351 = vsub.f32 %v327, %v343
    %v352 = vmul.f32 %v344, 1.442695
    %v353 = vpow.pop %v352
    %v354 = vmul.f32 %v345, 1.442695
    %v355 = vpow.pop %v354
    %v356 = vmul.f32 %v346, 1.442695
    %v357 = vpow.pop %v356
    %v358 = vmul.f32 %v347, 1.442695
    %v359 = vpow.pop %v358
    %v360 = vmul.f32 %v348, 1.442695
    %v361 = vpow.pop %v360
    %v362 = vmul.f32 %v349, 1.442695
    %v363 = vpow.pop %v362
    %v364 = vmul.f32 %v350, 1.442695
    %v365 = vpow.pop %v364
    %v366 = vmul.f32 %v351, 1.442695
    %v367 = vpow.pop %v366
    %v368 = vsel %vm328, %v353, 0.0
    %v369 = vsel %vm328, %v355, 0.0
    %v370 = vadd.f32 %v368, %v369
    %v371 = vsel %vm328, %v357, 0.0
    %v372 = vadd.f32 %v370, %v371
    %v373 = vsel %vm328, %v359, 0.0
    %v374 = vadd.f32 %v372, %v373
    %v375 = vsel %vm328, %v361, 0.0
    %v376 = vadd.f32 %v374, %v375
    %v377 = vsel %vm328, %v363, 0.0
    %v378 = vadd.f32 %v376, %v377
    %v379 = vsel %vm328, %v365, 0.0
    %v380 = vadd.f32 %v378, %v379
    %v381 = vsel %vm328, %v367, 0.0
    %v382 = vadd.f32 %v380, %v381
    %v383 = vrcp.pop %v382
    %v384 = vmul.f32 %v382, %v383
    %v385 = vsub.f32 1.0, %v384
    %v386 = vmul.f32 %v383, %v385
    %v387 = vadd.f32 %v383, %v386
    %vm388 = vweird.f32 %v382
    %vm389 = vweird.f32 %v383
    %vm390 = vmor %vm388, %vm389
    %v391 = vsel %vm390, %v383, %v387
    %v392 = vand.u32 2147483647, %v382
    %vm393 = vcmp.eq.f32.partialorder %v392, 8.507059e+37
    %v394 = vand.u32 %v382, 2147483648
    %v395 = vor.u32 1.1754944e-38, %v394
    %v396 = vsel %vm393, %v395, %v391
    %v397 = vmul.f32 %v353, %v396
    %v398 = vmul.f32 %v355, %v396
    %v399 = vmul.f32 %v357, %v396
    %v400 = vmul.f32 %v359, %v396
    %v401 = vmul.f32 %v361, %v396
    %v402 = vmul.f32 %v363, %v396
    %v403 = vmul.f32 %v365, %v396
    %v404 = vmul.f32 %v367, %v396
    %v405 = vld [vmem:[%s7] sm:$0xff]
    %v407 = vsel %vm328, %v397, 0
    %v410 = vsel %vm328, %v398, 0
    %v413 = vsel %vm328, %v399, 0
    %v416 = vsel %vm328, %v400, 0
    %v419 = vsel %vm328, %v401, 0
    %v422 = vsel %vm328, %v402, 0
    %v425 = vsel %vm328, %v403, 0
    %v428 = vsel %vm328, %v404, 0
    %430 = vmatpush.msra.mxu0 0.0
    %431 = vmatpush.msra.mxu0 0.0
    %432 = vmatpush.msra.mxu0 0.0
    %433 = vmatpush.msra.mxu0 0.0
    %434 = vmatpush.msra.mxu0 0.0
    %435 = vmatpush.msra.mxu0 0.0
    %436 = vmatpush.msra.mxu0 0.0
    %437 = vmatpush.msra.mxu0 0.0
    %438 = vmatpush.msra.mxu0 0.0
    %439 = vmatpush.msra.mxu0 0.0
    %440 = vmatpush.msra.mxu0 0.0
    %441 = vmatpush.msra.mxu0 0.0
    %442 = vmatpush.msra.mxu0 0.0
    %443 = vmatpush.msra.mxu0 0.0
    %444 = vmatpush.msra.mxu0 0.0
    %445 = vmatpush.msra.mxu0 %v405
    %446 = vmatmul.f32.gmra.mxu0 %v407
    %v447 = vpop.f32.mrf.mxu0
    %v448 = vadd.f32 0.0, %v447
    %449 = vmatmul.f32.gmra.mxu0 %v410
    %v450 = vpop.f32.mrf.mxu0
    %v451 = vadd.f32 0.0, %v450
    %452 = vmatmul.f32.gmra.mxu0 %v413
    %v453 = vpop.f32.mrf.mxu0
    %v454 = vadd.f32 0.0, %v453
    %455 = vmatmul.f32.gmra.mxu0 %v416
    %v456 = vpop.f32.mrf.mxu0
    %v457 = vadd.f32 0.0, %v456
    %458 = vmatmul.f32.gmra.mxu0 %v419
    %v459 = vpop.f32.mrf.mxu0
    %v460 = vadd.f32 0.0, %v459
    %461 = vmatmul.f32.gmra.mxu0 %v422
    %v462 = vpop.f32.mrf.mxu0
    %v463 = vadd.f32 0.0, %v462
    %464 = vmatmul.f32.gmra.mxu0 %v425
    %v465 = vpop.f32.mrf.mxu0
    %v466 = vadd.f32 0.0, %v465
    %467 = vmatmul.f32.gmra.mxu0 %v428
    %v468 = vpop.f32.mrf.mxu0
    %v469 = vadd.f32 0.0, %v468
    %470 = vdwg.mxu0
    %v471 = vmul.f32 %v448, %v214
    %v472 = vmul.f32 %v451, %v215
    %v473 = vmul.f32 %v454, %v216
    %v474 = vmul.f32 %v457, %v217
    %v475 = vmul.f32 %v460, %v218
    %v476 = vmul.f32 %v463, %v219
    %v477 = vmul.f32 %v466, %v220
    %v478 = vmul.f32 %v469, %v221
    %v479 = vsel %vm94, %v471, 0.0
    %v480 = vsel %vm94, %v472, 0.0
    %v481 = vadd.f32 %v479, %v480
    %v482 = vsel %vm94, %v473, 0.0
    %v483 = vadd.f32 %v481, %v482
    %v484 = vsel %vm94, %v474, 0.0
    %v485 = vadd.f32 %v483, %v484
    %v486 = vsel %vm94, %v475, 0.0
    %v487 = vadd.f32 %v485, %v486
    %v488 = vsel %vm94, %v476, 0.0
    %v489 = vadd.f32 %v487, %v488
    %v490 = vsel %vm94, %v477, 0.0
    %v491 = vadd.f32 %v489, %v490
    %v492 = vsel %vm94, %v478, 0.0
    %v493 = vadd.f32 %v491, %v492
    %v494 = vld [vmem:[%s9] sm:$0xff]
    %v495 = vld [vmem:[%s8] sm:$0xff]
    %v496 = vld [vmem:[%s8 + $0x8] sm:$0xff]
    %v497 = vld [vmem:[%s8 + $0x10] sm:$0xff]
    %v498 = vld [vmem:[%s8 + $0x18] sm:$0xff]
    %v499 = vld [vmem:[%s8 + $0x20] sm:$0xff]
    %v500 = vld [vmem:[%s8 + $0x28] sm:$0xff]
    %v501 = vld [vmem:[%s8 + $0x30] sm:$0xff]
    %v502 = vld [vmem:[%s8 + $0x38] sm:$0xff]
    %v503 = vperm.slane %v494, 0
    %v505 = vsel %vm94, %v493, 0
    %507 = vmatpush.msra.mxu0 0.0
    %508 = vmatpush.msra.mxu0 0.0
    %509 = vmatpush.msra.mxu0 0.0
    %510 = vmatpush.msra.mxu0 0.0
    %511 = vmatpush.msra.mxu0 0.0
    %512 = vmatpush.msra.mxu0 0.0
    %513 = vmatpush.msra.mxu0 0.0
    %514 = vmatpush.msra.mxu0 0.0
    %515 = vmatpush.msra.mxu0 %v502
    %516 = vmatpush.msra.mxu0 %v501
    %517 = vmatpush.msra.mxu0 %v500
    %518 = vmatpush.msra.mxu0 %v499
    %519 = vmatpush.msra.mxu0 %v498
    %520 = vmatpush.msra.mxu0 %v497
    %521 = vmatpush.msra.mxu0 %v496
    %522 = vmatpush.msra.mxu0 %v495
    %523 = vmatmul.f32.gmra.mxu0 %v505
    %v524 = vpop.f32.mrf.mxu0
    %v525 = vadd.f32 %v503, %v524
    %526 = vdwg.mxu0
    %v527 = vadd.f32 %v525, %v71
    %v528 = vsel %vm246, %v527, 0.0
    %529 = vadd.xlane.f32.xlu0 %v528
    %v530 = vpop.xlane.xlu0 %529
    %v531 = vrcp.pop 32.0
    %v532 = vmul.f32 32.0, %v531
    %v533 = vsub.f32 1.0, %v532
    %v534 = vmul.f32 %v531, %v533
    %v535 = vadd.f32 %v531, %v534
    %vm536 = vweird.f32 %v531
    %v537 = vsel %vm536, %v531, %v535
    %v538 = vmul.f32 %v530, %v537
    %v539 = vsub.f32 %v527, %v538
    %v540 = vmul.f32 %v539, %v539
    %v541 = vsel %vm246, %v540, 0.0
    %542 = vadd.xlane.f32.xlu0 %v541
    %v543 = vpop.xlane.xlu0 %542
    %v544 = vmul.f32 %v543, %v537
    %v545 = vadd.f32 %v544, 1e-05
    %v546 = vrsqrt.pop %v545
    %v547 = vmul.f32 %v546, %v545
    %v548 = vmul.f32 %v547, %v546
    %v549 = vmul.f32 0.5, %v548
    %v550 = vsub.f32 1.5, %v549
    %v551 = vmul.f32 %v546, %v550
    %vm552 = vweird.f32 %v545
    %vm553 = vweird.f32 %v546
    %vm554 = vmor %vm552, %vm553
    %v555 = vsel %vm554, %v546, %v551
    %v556 = vmul.f32 %v539, %v555
    %v557 = vperm.slane %v494, 1
    %v558 = vmul.f32 %v556, %v557
    %v559 = vperm.slane %v494, 2
    %v560 = vadd.f32 %v558, %v559
    %561 = vrot.lane.b32.xlu0 %v71, 96
    %v562 = vpop.permute.xlu0 %561
    %v564 = vmul.f32 %v156, %v562
    %566 = vrot.lane.b32.xlu0 %v157, 32
    %v567 = vpop.permute.xlu0 %566
    %v569 = vmul.f32 %v156, %v567
    %571 = vrot.lane.b32.xlu0 %v569, 32
    %v572 = vpop.permute.xlu0 %571
    %v574 = vadd.f32 %v564, %v572
    %v575 = vtanh.pop %v560
    %v576 = vmul.f32 %v176, %v575
    %578 = vrot.lane.b32.xlu0 %v576, 32
    %v579 = vpop.permute.xlu0 %578
    %v581 = vadd.f32 %v574, %v579
    %v582 = vtanh.pop %v581
    %584 = vrot.lane.b32.xlu0 %v582, 32
    %v585 = vpop.permute.xlu0 %584
    %v587 = vmul.f32 %v156, %v585
    %589 = vrot.lane.b32.xlu0 %v587, 64
    %v590 = vpop.permute.xlu0 %589
    %v592 = vsel %vm246, %v590, %v581
    %593 = vst.msk [vmem:[#allocation7] sm:$0xff] %vm94, %v592
    // Predicated region
    $region50: #{tpu_custom_call.1} parent=1 // pred_check
      _
    $region51: #{tpu_custom_call.1} parent=1 // pred_check_branch
      %595 = sbr.rel (0) target = $region53
    $region52: #{tpu_custom_call.1} parent=1 // pred_region
      %597 = vsyncadd [#allocation4], 0
      %s599 = sshll.u32 [#allocation7], 4
      %s600 = int_to_ptr.vmem [resolvable:$true] %s599
      %s601 = sshll.u32 %s10, 4
      %s602 = int_to_ptr.hbm [resolvable:$true] %s601
      %604 = dma.vmem_to_hbm [thread:$0]  %s600, 128, %s602, [#allocation4]
    $region53: #{tpu_custom_call.1} parent=1 // pred_fallthru
      _
    // Predicated region
    $region54: #{tpu_custom_call.1} parent=1 // pred_check
      _
    $region55: #{tpu_custom_call.1} parent=1 // pred_check_branch
      %606 = sbr.rel (0) target = $region57
    $region56: #{tpu_custom_call.1} parent=1 // pred_region
      %608 = vsyncadd [#allocation9], 0
      %s609 = sshll.u32 [#allocation8], 4
      %s610 = int_to_ptr.vmem [resolvable:$true] %s609
      %s611 = sshll.u32 %s11, 4
      %s612 = int_to_ptr.hbm [resolvable:$true] %s611
      %617 = dma.vmem_to_hbm [thread:$0]  %s610, 1024, %s612, [#allocation9], 128, 128, 8
    $region57: #{tpu_custom_call.1} parent=1 // pred_fallthru
      _
    // Predicated region
    $region58: #{tpu_custom_call.1} parent=1 // pred_check
      _
    $region59: #{tpu_custom_call.1} parent=1 // pred_check_branch
      %619 = sbr.rel (0) target = $region61
    $region60: #{tpu_custom_call.1} parent=1 // pred_region
      %621 = dma.done [#allocation4], 128
    $region61: #{tpu_custom_call.1} parent=1 // pred_fallthru
      _
    // Predicated region
    $region62: #{tpu_custom_call.1} parent=1 // pred_check
      _
    $region63: #{tpu_custom_call.1} parent=1 // pred_check_branch
      %623 = sbr.rel (0) target = $region65
    $region64: #{tpu_custom_call.1} parent=1 // pred_region
      %625 = dma.done [#allocation9], 1024
    $region65: #{tpu_custom_call.1} parent=1 // pred_fallthru
      _
    %626 = vsyncpa [#allocation3], 1
    %627 = vsyncpa [#allocation6], 1
    %628 = vsyncpa [#allocation4], 1
    %629 = vsyncpa [#allocation9], 1

</llo_original>
